<compile_context>
chip_gen: v6e
topology: v6e:2x2x1
jax: 0.10.0
libtpu: 0.0.40
codegen_flags: <defaults>
</compile_context>

<pallas_src>
import jax
import jax.numpy as jnp
from jax.experimental import pallas as pl
from jax.experimental.pallas import tpu as pltpu

EPS = 1e-5
NEG_SLOPE = 0.2


def _round_up(x, m):
    return -(-x // m) * m


def _vmem_limit_bytes():
    """Generation-aware scoped-VMEM limit (v7x: 64 MiB phys, v5e/v6e: 128 MiB)."""
    cap = 128 * 1024 * 1024
    try:
        cap = int(getattr(pltpu.get_tpu_info(), "vmem_capacity_bytes", cap))
    except Exception:
        pass
    return max(32 * 1024 * 1024, min((cap * 3) // 4, 96 * 1024 * 1024))


def _spatial_tile(s, k, c_out, budget):
    """Spatial (lane) tile: largest 128-multiple divisor of s whose
    double-buffered working set fits the budget; small s -> one tile/batch."""
    aligned = [t for t in (2048, 1024, 512, 256, 128) if s % t == 0]
    for ts in aligned:
        need = (2 * ts * k * 2              # double-buffered bf16 patch tile
                + 2 * c_out * k * 2         # double-buffered resident bf16 weight
                + 2 * ts * c_out * (2 + 4))  # bf16 y tile + f32 out tile
        if need <= budget:
            return ts, s
    if aligned:
        return aligned[-1], s               # smallest aligned tile
    if s <= 2048:
        return s, s                         # full-dim escape, no spatial padding
    return 128, _round_up(s, 128)           # odd large spatial: pad + trailing slice


# ---------------------------------------------------------------------------
# Pass 1: conv matmul (bf16 -> f32 acc) + per-tile per-channel sum / sum-sq.
# Fully "parallel" grid: partials are written per tile, combined in XLA.
# ---------------------------------------------------------------------------
def _conv_stats_kernel(p_ref, w_ref, y_ref, sum_ref, ssq_ref):
    # (Cout, K) bf16 @ (K, ts) bf16 -> (Cout, ts) f32 on the MXU.
    y = jnp.dot(w_ref[...], p_ref[0], preferred_element_type=jnp.float32)
    y_ref[0] = y.astype(jnp.bfloat16)                     # bf16 intermediate
    sum_ref[...] = jnp.sum(y, axis=1, keepdims=True)[None, None]
    ssq_ref[...] = jnp.sum(y * y, axis=1, keepdims=True)[None, None]


# ---------------------------------------------------------------------------
# Pass 2: fused affine BatchNorm + LeakyReLU (elementwise, NCHW-ordered tiles).
# ---------------------------------------------------------------------------
def _bn_lrelu_kernel(y_ref, scale_ref, shift_ref, o_ref):
    z = y_ref[0].astype(jnp.float32) * scale_ref[...] + shift_ref[...]
    o_ref[0] = jnp.where(z >= 0, z, NEG_SLOPE * z)


def downsampling_block(x_nchw, conv_weight, bn_gamma, bn_beta,
                       kernel_size=4, stride=2, padding=1):
    """x_nchw: (N, Cin, H, W); conv_weight: (Cout, Cin, KH, KW) (PyTorch layout)."""
    n, c_in, h, w = x_nchw.shape
    c_out, _, kh, kw = conv_weight.shape
    ho = (h + 2 * padding - kh) // stride + 1
    wo = (w + 2 * padding - kw) // stride + 1
    s = ho * wo                                  # spatial positions per batch
    k = kh * kw * c_in                           # im2col contraction size

    vmem_limit = _vmem_limit_bytes()
    ts, s_pad = _spatial_tile(s, k, c_out, vmem_limit // 2)
    s_tiles = s_pad // ts
    grid = (n, s_tiles)

    # --- XLA glue: channel-major im2col straight from NCHW, all in bf16 ------
    # patches[nb, (ikh,ikw,ci), oh*Wo+ow] = x_pad[nb, ci, s*oh+ikh, s*ow+ikw]
    xb = x_nchw.astype(jnp.bfloat16)             # early cast: halves glue traffic
    xp = jnp.pad(xb, ((0, 0), (0, 0), (padding, padding), (padding, padding)))
    slabs = []
    for ikh in range(kh):
        for ikw in range(kw):
            slabs.append(xp[:, :, ikh:ikh + stride * ho:stride,
                                  ikw:ikw + stride * wo:stride])
    patches = jnp.concatenate(slabs, axis=1).reshape(n, k, s)
    if s_pad != s:
        patches = jnp.pad(patches, ((0, 0), (0, 0), (0, s_pad - s)))

    # Weight flattened to (Cout, K) in the same (kh, kw, cin) K order.
    w2d = conv_weight.transpose(0, 2, 3, 1).reshape(c_out, k).astype(jnp.bfloat16)

    # --- pass 1: conv + per-tile channel stats (both axes megacore-parallel) --
    y_bf16, sum_part, ssq_part = pl.pallas_call(
        _conv_stats_kernel,
        out_shape=(jax.ShapeDtypeStruct((n, c_out, s_pad), jnp.bfloat16),
                   jax.ShapeDtypeStruct((n, s_tiles, c_out, 1), jnp.float32),
                   jax.ShapeDtypeStruct((n, s_tiles, c_out, 1), jnp.float32)),
        grid=grid,
        in_specs=[
            pl.BlockSpec((1, k, ts), lambda nb, j: (nb, 0, j)),
            pl.BlockSpec((c_out, k), lambda nb, j: (0, 0)),    # resident weight
        ],
        out_specs=(
            pl.BlockSpec((1, c_out, ts), lambda nb, j: (nb, 0, j)),
            pl.BlockSpec((1, 1, c_out, 1), lambda nb, j: (nb, j, 0, 0)),
            pl.BlockSpec((1, 1, c_out, 1), lambda nb, j: (nb, j, 0, 0)),
        ),
        compiler_params=pltpu.CompilerParams(
            dimension_semantics=("parallel", "parallel"),
            vmem_limit_bytes=vmem_limit),
    )(patches, w2d)

    # --- tiny f32 finalize (padded spatial columns contribute exact zeros) ----
    m_total = n * s
    ch_sum = jnp.sum(sum_part, axis=(0, 1, 3))
    ch_ssq = jnp.sum(ssq_part, axis=(0, 1, 3))
    mean = ch_sum / m_total
    var = jnp.maximum(ch_ssq / m_total - mean * mean, 0.0)    # guard roundoff
    scale = (bn_gamma.astype(jnp.float32) * jax.lax.rsqrt(var + EPS)).reshape(c_out, 1)
    shift = (bn_beta.astype(jnp.float32).reshape(c_out, 1)
             - mean.reshape(c_out, 1) * scale)

    # --- pass 2: fused BatchNorm + LeakyReLU, NCHW-ordered output tiles -------
    out3 = pl.pallas_call(
        _bn_lrelu_kernel,
        out_shape=jax.ShapeDtypeStruct((n, c_out, s_pad), jnp.float32),
        grid=grid,
        in_specs=[
            pl.BlockSpec((1, c_out, ts), lambda nb, j: (nb, 0, j)),
            pl.BlockSpec((c_out, 1), lambda nb, j: (0, 0)),
            pl.BlockSpec((c_out, 1), lambda nb, j: (0, 0)),
        ],
        out_specs=pl.BlockSpec((1, c_out, ts), lambda nb, j: (nb, 0, j)),
        compiler_params=pltpu.CompilerParams(
            dimension_semantics=("parallel", "parallel"),
            vmem_limit_bytes=vmem_limit),
    )(y_bf16, scale, shift)

    if s_pad != s:
        out3 = out3[:, :, :s]
    return out3.reshape(n, c_out, ho, wo)        # already NCHW: free reshape


def _reference(x, w, gamma, beta):
    """Pure-JAX f32 reference (conv -> training-mode BN -> LeakyReLU)."""
    y = jax.lax.conv_general_dilated(
        x, w, window_strides=(2, 2), padding=((1, 1), (1, 1)),
        dimension_numbers=("NCHW", "OIHW", "NCHW"))
    mean = y.mean(axis=(0, 2, 3), keepdims=True)
    var = ((y - mean) ** 2).mean(axis=(0, 2, 3), keepdims=True)
    yb = (y - mean) * jax.lax.rsqrt(var + EPS)
    yb = yb * gamma.reshape(1, -1, 1, 1) + beta.reshape(1, -1, 1, 1)
    return jnp.where(yb >= 0, yb, NEG_SLOPE * yb)


if __name__ == "__main__":
    key = jax.random.PRNGKey(0)
    k_x, k_w = jax.random.split(key)

    N, C_IN, C_OUT, H, W = 2, 4, 8, 16, 16

    x = jax.random.normal(k_x, (N, C_IN, H, W), dtype=jnp.float32)
    # Deterministic synthetic params: conv weight ~ N(0, 0.05^2),
    # BatchNorm gamma=1, beta=0 (PyTorch defaults).
    conv_w = 0.05 * jax.random.normal(k_w, (C_OUT, C_IN, 4, 4), dtype=jnp.float32)
    gamma = jnp.ones((C_OUT,), dtype=jnp.float32)
    beta = jnp.zeros((C_OUT,), dtype=jnp.float32)

    fwd = jax.jit(lambda xx, ww, gg, bb: downsampling_block(xx, ww, gg, bb))
    out = fwd(x, conv_w, gamma, beta)
    jax.block_until_ready(out)

    assert out.shape == (N, C_OUT, H // 2, W // 2), out.shape
    ref = _reference(x, conv_w, gamma, beta)
    assert bool(jnp.all(jnp.isfinite(out)))
    assert bool(jnp.allclose(out, ref, atol=5e-2, rtol=5e-2)), (
        float(jnp.max(jnp.abs(out - ref))))
    print("KERNEL_OK")
</pallas_src>

<mosaic_0001>
module attributes {stable_mosaic.version = 11 : i64} {
  func.func @_conv_stats_kernel(%arg0: i32, %arg1: i32, %arg2: memref<1x64x64xbf16, #tpu.memory_space<vmem>>, %arg3: memref<8x64xbf16, #tpu.memory_space<vmem>>, %arg4: memref<1x8x64xbf16, #tpu.memory_space<vmem>>, %arg5: memref<1x1x8x1xf32, #tpu.memory_space<vmem>>, %arg6: memref<1x1x8x1xf32, #tpu.memory_space<vmem>>) attributes {dimension_semantics = [#tpu.dimension_semantics<parallel>, #tpu.dimension_semantics<parallel>], iteration_bounds = array<i64: 2, 1>, scalar_prefetch = 0 : i64, scratch_operands = 0 : i64, tpu.core_type = #tpu.core_type<tc>, window_params = [{transform_indices = @transform_0, window_bounds = array<i64: 1, 64, 64>}, {pipeline_mode = #tpu.pipeline_mode<synchronous>, transform_indices = @transform_1, window_bounds = array<i64: 8, 64>}, {transform_indices = @transform_2, window_bounds = array<i64: 1, 8, 64>}, {transform_indices = @transform_3, window_bounds = array<i64: 1, 1, 8, 1>}, {transform_indices = @transform_4, window_bounds = array<i64: 1, 1, 8, 1>}]} {
    %c0 = arith.constant 0 : index
    %c0_0 = arith.constant 0 : index
    %0 = vector.load %arg3[%c0, %c0_0] : memref<8x64xbf16, #tpu.memory_space<vmem>>, vector<8x64xbf16>
    %c0_1 = arith.constant 0 : index
    %c0_2 = arith.constant 0 : index
    %c0_3 = arith.constant 0 : index
    %1 = vector.load %arg2[%c0_1, %c0_2, %c0_3] : memref<1x64x64xbf16, #tpu.memory_space<vmem>>, vector<1x64x64xbf16>
    %2 = vector.shape_cast %1 : vector<1x64x64xbf16> to vector<64x64xbf16>
    %cst = arith.constant dense<0.000000e+00> : vector<8x64xf32>
    %3 = tpu.matmul %0, %2, %cst {dimension_numbers = #tpu.dot_dimension_numbers<[1], [0], [0], [1], [0, 0, 1, 1], [], []>} : vector<8x64xbf16>, vector<64x64xbf16>, vector<8x64xf32> -> vector<8x64xf32>
    %4 = arith.truncf %3 : vector<8x64xf32> to vector<8x64xbf16>
    %c0_4 = arith.constant 0 : index
    %c0_5 = arith.constant 0 : index
    %c0_6 = arith.constant 0 : index
    %5 = vector.load %arg4[%c0_4, %c0_5, %c0_6] : memref<1x8x64xbf16, #tpu.memory_space<vmem>>, vector<1x8x64xbf16>
    %6 = vector.shape_cast %5 : vector<1x8x64xbf16> to vector<8x64xbf16>
    %7 = vector.shape_cast %4 : vector<8x64xbf16> to vector<1x8x64xbf16>
    tpu.vector_store %arg4[%c0_4, %c0_5, %c0_6], %7 {strides = array<i32>} : memref<1x8x64xbf16, #tpu.memory_space<vmem>>, vector<1x8x64xbf16>,
    %cst_7 = arith.constant dense<0.000000e+00> : vector<8xf32>
    %8 = vector.multi_reduction <add>, %3, %cst_7 [1] : vector<8x64xf32> to vector<8xf32>
    %9 = vector.shape_cast %8 : vector<8xf32> to vector<8x1xf32>
    %10 = vector.shape_cast %9 : vector<8x1xf32> to vector<1x1x8x1xf32>
    %c0_8 = arith.constant 0 : index
    %c0_9 = arith.constant 0 : index
    %c0_10 = arith.constant 0 : index
    %c0_11 = arith.constant 0 : index
    %11 = vector.load %arg5[%c0_8, %c0_9, %c0_10, %c0_11] : memref<1x1x8x1xf32, #tpu.memory_space<vmem>>, vector<1x1x8x1xf32>
    tpu.vector_store %arg5[%c0_8, %c0_9, %c0_10, %c0_11], %10 {strides = array<i32>} : memref<1x1x8x1xf32, #tpu.memory_space<vmem>>, vector<1x1x8x1xf32>,
    %12 = arith.mulf %3, %3 : vector<8x64xf32>
    %cst_12 = arith.constant dense<0.000000e+00> : vector<8xf32>
    %13 = vector.multi_reduction <add>, %12, %cst_12 [1] : vector<8x64xf32> to vector<8xf32>
    %14 = vector.shape_cast %13 : vector<8xf32> to vector<8x1xf32>
    %15 = vector.shape_cast %14 : vector<8x1xf32> to vector<1x1x8x1xf32>
    %c0_13 = arith.constant 0 : index
    %c0_14 = arith.constant 0 : index
    %c0_15 = arith.constant 0 : index
    %c0_16 = arith.constant 0 : index
    %16 = vector.load %arg6[%c0_13, %c0_14, %c0_15, %c0_16] : memref<1x1x8x1xf32, #tpu.memory_space<vmem>>, vector<1x1x8x1xf32>
    tpu.vector_store %arg6[%c0_13, %c0_14, %c0_15, %c0_16], %15 {strides = array<i32>} : memref<1x1x8x1xf32, #tpu.memory_space<vmem>>, vector<1x1x8x1xf32>,
    return
  }
  func.func @transform_0(%arg0: i32, %arg1: i32) -> (i32, i32, i32) {
    %c0_i32 = arith.constant 0 : i32
    %c0_i32_0 = arith.constant 0 : i32
    return %arg0, %c0_i32, %arg1 : i32, i32, i32
  }
  func.func @transform_1(%arg0: i32, %arg1: i32) -> (i32, i32) {
    %c0_i32 = arith.constant 0 : i32
    %c0_i32_0 = arith.constant 0 : i32
    %c0_i32_1 = arith.constant 0 : i32
    return %c0_i32, %c0_i32_0 : i32, i32
  }
  func.func @transform_2(%arg0: i32, %arg1: i32) -> (i32, i32, i32) {
    %c0_i32 = arith.constant 0 : i32
    %c0_i32_0 = arith.constant 0 : i32
    return %arg0, %c0_i32, %arg1 : i32, i32, i32
  }
  func.func @transform_3(%arg0: i32, %arg1: i32) -> (i32, i32, i32, i32) {
    %c0_i32 = arith.constant 0 : i32
    %c0_i32_0 = arith.constant 0 : i32
    %c0_i32_1 = arith.constant 0 : i32
    return %arg0, %arg1, %c0_i32, %c0_i32_0 : i32, i32, i32, i32
  }
  func.func @transform_4(%arg0: i32, %arg1: i32) -> (i32, i32, i32, i32) {
    %c0_i32 = arith.constant 0 : i32
    %c0_i32_0 = arith.constant 0 : i32
    %c0_i32_1 = arith.constant 0 : i32
    return %arg0, %arg1, %c0_i32, %c0_i32_0 : i32, i32, i32, i32
  }
}

module attributes {stable_mosaic.version = 11 : i64} {
  func.func @_bn_lrelu_kernel(%arg0: i32, %arg1: i32, %arg2: memref<1x8x64xbf16, #tpu.memory_space<vmem>>, %arg3: memref<8x1xf32, #tpu.memory_space<vmem>>, %arg4: memref<8x1xf32, #tpu.memory_space<vmem>>, %arg5: memref<1x8x64xf32, #tpu.memory_space<vmem>>) attributes {dimension_semantics = [#tpu.dimension_semantics<parallel>, #tpu.dimension_semantics<parallel>], iteration_bounds = array<i64: 2, 1>, scalar_prefetch = 0 : i64, scratch_operands = 0 : i64, tpu.core_type = #tpu.core_type<tc>, window_params = [{transform_indices = @transform_0, window_bounds = array<i64: 1, 8, 64>}, {pipeline_mode = #tpu.pipeline_mode<synchronous>, transform_indices = @transform_1, window_bounds = array<i64: 8, 1>}, {pipeline_mode = #tpu.pipeline_mode<synchronous>, transform_indices = @transform_2, window_bounds = array<i64: 8, 1>}, {transform_indices = @transform_3, window_bounds = array<i64: 1, 8, 64>}]} {
    %c0 = arith.constant 0 : index
    %c0_0 = arith.constant 0 : index
    %c0_1 = arith.constant 0 : index
    %0 = vector.load %arg2[%c0, %c0_0, %c0_1] : memref<1x8x64xbf16, #tpu.memory_space<vmem>>, vector<1x8x64xbf16>
    %1 = vector.shape_cast %0 : vector<1x8x64xbf16> to vector<8x64xbf16>
    %2 = arith.extf %1 : vector<8x64xbf16> to vector<8x64xf32>
    %c0_2 = arith.constant 0 : index
    %c0_3 = arith.constant 0 : index
    %3 = vector.load %arg3[%c0_2, %c0_3] : memref<8x1xf32, #tpu.memory_space<vmem>>, vector<8x1xf32>
    %4 = vector.broadcast %3 : vector<8x1xf32> to vector<8x64xf32>
    %5 = arith.mulf %2, %4 : vector<8x64xf32>
    %c0_4 = arith.constant 0 : index
    %c0_5 = arith.constant 0 : index
    %6 = vector.load %arg4[%c0_4, %c0_5] : memref<8x1xf32, #tpu.memory_space<vmem>>, vector<8x1xf32>
    %7 = vector.broadcast %6 : vector<8x1xf32> to vector<8x64xf32>
    %8 = arith.addf %5, %7 : vector<8x64xf32>
    %cst = arith.constant 0.000000e+00 : f32
    %9 = vector.broadcast %cst : f32 to vector<8x64xf32>
    %10 = arith.cmpf oge, %8, %9 : vector<8x64xf32>
    %cst_6 = arith.constant 2.000000e-01 : f32
    %11 = vector.broadcast %cst_6 : f32 to vector<8x64xf32>
    %12 = arith.mulf %11, %8 : vector<8x64xf32>
    %13 = arith.select %10, %8, %12 : vector<8x64xi1>, vector<8x64xf32>
    %c0_7 = arith.constant 0 : index
    %c0_8 = arith.constant 0 : index
    %c0_9 = arith.constant 0 : index
    %14 = vector.load %arg5[%c0_7, %c0_8, %c0_9] : memref<1x8x64xf32, #tpu.memory_space<vmem>>, vector<1x8x64xf32>
    %15 = vector.shape_cast %14 : vector<1x8x64xf32> to vector<8x64xf32>
    %16 = vector.shape_cast %13 : vector<8x64xf32> to vector<1x8x64xf32>
    tpu.vector_store %arg5[%c0_7, %c0_8, %c0_9], %16 {strides = array<i32>} : memref<1x8x64xf32, #tpu.memory_space<vmem>>, vector<1x8x64xf32>,
    return
  }
  func.func @transform_0(%arg0: i32, %arg1: i32) -> (i32, i32, i32) {
    %c0_i32 = arith.constant 0 : i32
    %c0_i32_0 = arith.constant 0 : i32
    return %arg0, %c0_i32, %arg1 : i32, i32, i32
  }
  func.func @transform_1(%arg0: i32, %arg1: i32) -> (i32, i32) {
    %c0_i32 = arith.constant 0 : i32
    %c0_i32_0 = arith.constant 0 : i32
    %c0_i32_1 = arith.constant 0 : i32
    return %c0_i32, %c0_i32_0 : i32, i32
  }
  func.func @transform_2(%arg0: i32, %arg1: i32) -> (i32, i32) {
    %c0_i32 = arith.constant 0 : i32
    %c0_i32_0 = arith.constant 0 : i32
    %c0_i32_1 = arith.constant 0 : i32
    return %c0_i32, %c0_i32_0 : i32, i32
  }
  func.func @transform_3(%arg0: i32, %arg1: i32) -> (i32, i32, i32) {
    %c0_i32 = arith.constant 0 : i32
    %c0_i32_0 = arith.constant 0 : i32
    return %arg0, %c0_i32, %arg1 : i32, i32, i32
  }
}

</mosaic_0001>

<llo_original>
// kernel: _lambda_.3
$region0: #{_lambda_.3}
  #allocation0 [shape = 'u32[]', space=smem, size = 0x4, offset = 0x4, fixed_abs, tag = 'smem constant byte address 0x4 - core index']
  #allocation1 [shape = 'u32[144,128]{1,0:T(1,128)}', space=vmem, size = 0x12000, scoped, tag = 'internal scratch']
  %s0 = inlined_call_operand.vmem [shape: bf16[2,8,64], index: 0, kind: input, shape index: {}]
  %s1 = inlined_call_operand.vmem [shape: f32[8,1], index: 1, kind: input, shape index: {}]
  %s2 = inlined_call_operand.vmem [shape: f32[8,1], index: 2, kind: input, shape index: {}]
  %s3 = inlined_call_operand.vmem [shape: f32[2,8,64], index: 3, kind: output, shape index: {}]
  %s4 = sld [smem:[#allocation0]]
  $region45: #{_lambda_.3} parent=0
    _
  %s6 = ssub.s32 1, %s4
  %s7 = scalar_select 0, %s6, %s4
  loop: start=0, step=1, limit=4
  $region2: #{_lambda_.3} parent=0 // loop_pre_header
    _
  $region3: #{_lambda_.3} parent=0 // loop_header
    %s9 = sphi 0, %s13
    %p10 = scmp.ge.s32.totalorder %s9, 4
    %s16 = sphi 0, %s28
    %s17 = sphi 0, %s24
    %s18 = sphi 0, %s16
    %s19 = sphi 0, %s17
    %s20 = sphi 0, %s18
    %s21 = sphi 0, %s19
    %s33 = sphi 0, %s35
    %s36 = sphi 0, %s33
    %s37 = sphi 0, %s36
    %s53 = sphi 0, %s37
    %s57 = sphi 0, %s57
    %s59 = sphi 0, %s57
    %s60 = sphi 0, %s59
    %s74 = sphi 0, %s60
    %s78 = sphi 0, %s78
    %s80 = sphi 0, %s78
    %s81 = sphi 0, %s80
    %s95 = sphi 0, %s81
    %s103 = sphi 0, %s105
    %s106 = sphi 0, %s103
    %s107 = sphi 0, %s106
    %s123 = sphi 0, %s107
  $region4: #{_lambda_.3} parent=0 // loop_header_branch
    %12 = sbr.rel (%p10) target = $region8
  $region5: #{_lambda_.3} parent=0 // loop_body
    %s14 = ssub.s32 %s9, 1
    %s15 = ssub.s32 %s9, 2
    %s22 = sadd.s32 1, %s17
    %p23 = scmp.ge.s32.totalorder %s22, 1
    %s24 = scalar_select %p23, 0, %s22
    %s25 = sadd.s32 1, %s16
    %s26 = scalar_select %p23, %s25, %s16
    %p27 = scmp.ge.s32.totalorder %s26, 2
    %s28 = scalar_select %p27, 0, %s26
    %s29 = ssub.s32 %s16, %s28
    %s30 = ssub.s32 %s17, %s24
    %s31 = sor.u32 %s29, %s30
    %p32 = scmp.eq.s32.totalorder %s31, 0
    %s34 = sadd.s32 %s33, 1
    %s35 = scalar_select %p32, %s33, %s34
    %p38 = pneg %p32
    %p39 = scmp.eq.s32.totalorder %s9, 1
    %p40 = por %p38, %p39
    %p41 = scmp.ne.s32.totalorder %s33, %s36
    %p42 = scmp.eq.s32.totalorder %s9, 0
    %p43 = por %p41, %p42
    %p44 = scmp.ne.s32.totalorder %s33, %s36
    %p45 = scmp.eq.s32.totalorder %s14, 1
    %p46 = por %p44, %p45
    %p47 = scmp.ne.s32.totalorder %s36, %s37
    %p48 = scmp.eq.s32.totalorder %s14, 0
    %p49 = por %p47, %p48
    %p50 = scmp.ne.s32.totalorder %s36, %s37
    %p51 = scmp.eq.s32.totalorder %s15, 1
    %p52 = por %p50, %p51
    %p54 = scmp.ne.s32.totalorder %s37, %s53
    %p55 = scmp.eq.s32.totalorder %s15, 0
    %p56 = por %p54, %p55
    %s58 = sadd.s32 %s57, 1
    %p61 = scmp.eq.s32.totalorder %s9, 1
    %p62 = scmp.ne.s32.totalorder %s57, %s59
    %p63 = scmp.eq.s32.totalorder %s9, 0
    %p64 = por %p62, %p63
    %p65 = scmp.ne.s32.totalorder %s57, %s59
    %p66 = scmp.eq.s32.totalorder %s14, 1
    %p67 = por %p65, %p66
    %p68 = scmp.ne.s32.totalorder %s59, %s60
    %p69 = scmp.eq.s32.totalorder %s14, 0
    %p70 = por %p68, %p69
    %p71 = scmp.ne.s32.totalorder %s59, %s60
    %p72 = scmp.eq.s32.totalorder %s15, 1
    %p73 = por %p71, %p72
    %p75 = scmp.ne.s32.totalorder %s60, %s74
    %p76 = scmp.eq.s32.totalorder %s15, 0
    %p77 = por %p75, %p76
    %s79 = sadd.s32 %s78, 1
    %p82 = scmp.eq.s32.totalorder %s9, 1
    %p83 = scmp.ne.s32.totalorder %s78, %s80
    %p84 = scmp.eq.s32.totalorder %s9, 0
    %p85 = por %p83, %p84
    %p86 = scmp.ne.s32.totalorder %s78, %s80
    %p87 = scmp.eq.s32.totalorder %s14, 1
    %p88 = por %p86, %p87
    %p89 = scmp.ne.s32.totalorder %s80, %s81
    %p90 = scmp.eq.s32.totalorder %s14, 0
    %p91 = por %p89, %p90
    %p92 = scmp.ne.s32.totalorder %s80, %s81
    %p93 = scmp.eq.s32.totalorder %s15, 1
    %p94 = por %p92, %p93
    %p96 = scmp.ne.s32.totalorder %s81, %s95
    %p97 = scmp.eq.s32.totalorder %s15, 0
    %p98 = por %p96, %p97
    %s99 = ssub.s32 %s16, %s28
    %s100 = ssub.s32 %s17, %s24
    %s101 = sor.u32 %s99, %s100
    %p102 = scmp.eq.s32.totalorder %s101, 0
    %s104 = sadd.s32 %s103, 1
    %s105 = scalar_select %p102, %s103, %s104
    %p108 = pneg %p102
    %p109 = scmp.eq.s32.totalorder %s9, 1
    %p110 = por %p108, %p109
    %p111 = scmp.ne.s32.totalorder %s103, %s106
    %p112 = scmp.eq.s32.totalorder %s9, 0
    %p113 = por %p111, %p112
    %p114 = scmp.ne.s32.totalorder %s103, %s106
    %p115 = scmp.eq.s32.totalorder %s14, 1
    %p116 = por %p114, %p115
    %p117 = scmp.ne.s32.totalorder %s106, %s107
    %p118 = scmp.eq.s32.totalorder %s14, 0
    %p119 = por %p117, %p118
    %p120 = scmp.ne.s32.totalorder %s106, %s107
    %p121 = scmp.eq.s32.totalorder %s15, 1
    %p122 = por %p120, %p121
    %p124 = scmp.ne.s32.totalorder %s107, %s123
    %p125 = scmp.eq.s32.totalorder %s15, 0
    %p126 = por %p124, %p125
    %p127 = scmp.le.s32.totalorder 1, %s9
    %p128 = scmp.lt.s32.totalorder %s9, 3
    %p129 = pnand %p127, %p128
    %p130 = pneg %p129
    // Predicated region
    $region9: #{_lambda_.3} parent=5 // pred_check
      _
    $region10: #{_lambda_.3} parent=5 // pred_check_branch
      %132 = sbr.rel (%p129) target = $region12
    $region11: #{_lambda_.3} parent=5 // pred_region
      %s133 = ssub.s32 %s9, 1
      // Predicated region
      $region13: #{_lambda_.3} parent=11 // pred_check
        %p134 = pneg %p70
      $region14: #{_lambda_.3} parent=11 // pred_check_branch
        %136 = sbr.rel (%p134) target = $region16
      $region15: #{_lambda_.3} parent=11 // pred_region
        _
      $region16: #{_lambda_.3} parent=11 // pred_fallthru
        _
      // Predicated region
      $region17: #{_lambda_.3} parent=11 // pred_check
        %p137 = pneg %p91
      $region18: #{_lambda_.3} parent=11 // pred_check_branch
        %139 = sbr.rel (%p137) target = $region20
      $region19: #{_lambda_.3} parent=11 // pred_region
        _
      $region20: #{_lambda_.3} parent=11 // pred_fallthru
        _
    $region12: #{_lambda_.3} parent=5 // pred_fallthru
      _
    %p140 = scmp.lt.s32.totalorder %s9, 2
    // Predicated region
    $region21: #{_lambda_.3} parent=5 // pred_check
      %p141 = pneg %p140
    $region22: #{_lambda_.3} parent=5 // pred_check_branch
      %143 = sbr.rel (%p141) target = $region24
    $region23: #{_lambda_.3} parent=5 // pred_region
      // Predicated region
      $region25: #{_lambda_.3} parent=23 // pred_check
        %p144 = pneg %p43
      $region26: #{_lambda_.3} parent=23 // pred_check_branch
        %146 = sbr.rel (%p144) target = $region28
      $region27: #{_lambda_.3} parent=23 // pred_region
        %p147 = scmp.lt.s32.totalorder %s16, 1
        %s148 = scalar_select %p147, %s16, 1
        %p149 = scmp.lt.s32.totalorder %s17, 0
        %s150 = scalar_select %p149, %s17, 0
        %s151 = sadd.s32 %s150, %s148
        %s152 = smul.addr %s151, 4
        %s153 = scalar_lea.vmem %s0, %s152
      $region28: #{_lambda_.3} parent=23 // pred_fallthru
        _
    $region24: #{_lambda_.3} parent=5 // pred_fallthru
      _
    %p154 = scmp.le.s32.totalorder 1, %s9
    %p155 = scmp.lt.s32.totalorder %s9, 3
    %p156 = pnand %p154, %p155
    %p157 = pneg %p156
    // Predicated region
    $region29: #{_lambda_.3} parent=5 // pred_check
      _
    $region30: #{_lambda_.3} parent=5 // pred_check_branch
      %159 = sbr.rel (%p156) target = $region32
    $region31: #{_lambda_.3} parent=5 // pred_region
      %s160 = ssub.s32 %s9, 1
      %p161 = scmp.lt.s32.totalorder %s18, 1
      %s162 = scalar_select %p161, %s18, 1
      %p163 = scmp.lt.s32.totalorder %s19, 0
      %s164 = scalar_select %p163, %s19, 0
      %s165 = sadd.s32 %s164, %s162
      %s166 = smul.addr %s165, 4
      %s167 = scalar_lea.vmem %s0, %s166
      %p168 = pneg %p49
      %p169 = pneg %p46
      %p170 = pneg %p70
      %p171 = pneg %p67
      %p172 = pneg %p91
      %p173 = pneg %p88
      %p174 = pneg %p119
      %p175 = pneg %p116
      %p176 = scmp.lt.s32.totalorder %s18, 1
      %s177 = scalar_select %p176, %s18, 1
      %p178 = scmp.lt.s32.totalorder %s19, 0
      %s179 = scalar_select %p178, %s19, 0
      %s180 = sadd.s32 %s179, %s177
      %s181 = smul.addr %s180, 8
      %s182 = scalar_lea.vmem %s3, %s181
      %p183 = scmp.lt.s32.totalorder %s18, 1
      %s184 = scalar_select %p183, %s18, 1
      %p185 = scmp.lt.s32.totalorder %s19, 0
      %s186 = scalar_select %p185, %s19, 0
      %s187 = sadd.s32 %s186, %s184
      %s188 = smul.addr %s187, 4
      %s189 = scalar_lea.vmem %s0, %s188
      %p190 = scmp.lt.s32.totalorder %s18, 1
      %s191 = scalar_select %p190, %s18, 1
      %p192 = scmp.lt.s32.totalorder %s19, 0
      %s193 = scalar_select %p192, %s19, 0
      %s194 = sadd.s32 %s193, %s191
      %s195 = smul.addr %s194, 8
      %s196 = scalar_lea.vmem %s3, %s195
      %v197 = vld [vmem:[%s189] sm:$0xf]
      %v198 = vunpack.c.l.bf16 %v197
      %v199 = vld [vmem:[%s1] sm:$0xff]
      %201 = vset.pattern.permute.xlu0 0
      %202 = vperm.xlu0 %201, %v199
      %v203 = vpop.permute.xlu0 %202
      %v205 = vmul.f32 %v198, %v203
      %v206 = vld [vmem:[%s2] sm:$0xff]
      %208 = vset.pattern.permute.xlu0 0
      %209 = vperm.xlu0 %208, %v206
      %v210 = vpop.permute.xlu0 %209
      %v212 = vadd.f32 %v205, %v210
      %vm213 = vcmp.ge.f32.partialorder %v212, 0.0
      %v214 = vmul.f32 %v212, 0.2
      %v215 = vsel %vm213, %v212, %v214
      %vm216 = vcmask 523264
      %217 = vst.msk [vmem:[%s196] sm:$0xff] %vm216, %v215
      %p218 = scmp.lt.s32.totalorder %s18, 1
      %s219 = scalar_select %p218, %s18, 1
      %p220 = scmp.lt.s32.totalorder %s19, 0
      %s221 = scalar_select %p220, %s19, 0
      %s222 = sadd.s32 %s221, %s219
      %s223 = smul.addr %s222, 8
      %s224 = scalar_lea.vmem %s3, %s223
      // Predicated region
      $region33: #{_lambda_.3} parent=31 // pred_check
        %p225 = pneg %p116
      $region34: #{_lambda_.3} parent=31 // pred_check_branch
        %227 = sbr.rel (%p225) target = $region36
      $region35: #{_lambda_.3} parent=31 // pred_region
        _
      $region36: #{_lambda_.3} parent=31 // pred_fallthru
        _
    $region32: #{_lambda_.3} parent=5 // pred_fallthru
      _
    %p228 = scmp.le.s32.totalorder 2, %s9
    // Predicated region
    $region37: #{_lambda_.3} parent=5 // pred_check
      %p229 = pneg %p228
    $region38: #{_lambda_.3} parent=5 // pred_check_branch
      %231 = sbr.rel (%p229) target = $region40
    $region39: #{_lambda_.3} parent=5 // pred_region
      %s232 = ssub.s32 %s9, 2
      // Predicated region
      $region41: #{_lambda_.3} parent=39 // pred_check
        %p233 = pneg %p122
      $region42: #{_lambda_.3} parent=39 // pred_check_branch
        %235 = sbr.rel (%p233) target = $region44
      $region43: #{_lambda_.3} parent=39 // pred_region
        %p236 = scmp.lt.s32.totalorder %s20, 1
        %s237 = scalar_select %p236, %s20, 1
        %p238 = scmp.lt.s32.totalorder %s21, 0
        %s239 = scalar_select %p238, %s21, 0
        %s240 = sadd.s32 %s239, %s237
        %s241 = smul.addr %s240, 8
        %s242 = scalar_lea.vmem %s3, %s241
      $region44: #{_lambda_.3} parent=39 // pred_fallthru
        _
    $region40: #{_lambda_.3} parent=5 // pred_fallthru
      _
  $region6: #{_lambda_.3} parent=0 // loop_footer
    %s13 = sadd.s32 1, %s9
  $region7: #{_lambda_.3} parent=0 // loop_footer_branch
    %8 = sbr.rel target = $region3
  $region8: #{_lambda_.3} parent=0 // loop_exit
    _

// kernel: _lambda_.2
$region0: #{_lambda_.2}
  #allocation0 [shape = 'u32[]', space=smem, size = 0x4, offset = 0x4, fixed_abs, tag = 'smem constant byte address 0x4 - core index']
  #allocation1 [shape = 'u32[144,128]{1,0:T(1,128)}', space=vmem, size = 0x12000, scoped, tag = 'internal scratch']
  %s0 = inlined_call_operand.vmem [shape: bf16[2,64,64], index: 0, kind: input, shape index: {}]
  %s1 = inlined_call_operand.vmem [shape: bf16[8,64], index: 1, kind: input, shape index: {}]
  %s2 = inlined_call_operand.vmem [shape: bf16[2,8,64], index: 2, kind: output, shape index: {0}]
  %s3 = inlined_call_operand.vmem [shape: f32[2,1,8,1], index: 3, kind: output, shape index: {1}]
  %s4 = inlined_call_operand.vmem [shape: f32[2,1,8,1], index: 4, kind: output, shape index: {2}]
  %5 = xla_tuple %s2, %s3, %s4
  %s6 = sld [smem:[#allocation0]]
  $region57: #{_lambda_.2} parent=0
    _
  %s8 = ssub.s32 1, %s6
  %s9 = scalar_select 0, %s8, %s6
  loop: start=0, step=1, limit=4
  $region2: #{_lambda_.2} parent=0 // loop_pre_header
    _
  $region3: #{_lambda_.2} parent=0 // loop_header
    %s11 = sphi 0, %s15
    %p12 = scmp.ge.s32.totalorder %s11, 4
    %s18 = sphi 0, %s30
    %s19 = sphi 0, %s26
    %s20 = sphi 0, %s18
    %s21 = sphi 0, %s19
    %s22 = sphi 0, %s20
    %s23 = sphi 0, %s21
    %s35 = sphi 0, %s37
    %s38 = sphi 0, %s35
    %s39 = sphi 0, %s38
    %s55 = sphi 0, %s39
    %s59 = sphi 0, %s59
    %s61 = sphi 0, %s59
    %s62 = sphi 0, %s61
    %s76 = sphi 0, %s62
    %s84 = sphi 0, %s86
    %s87 = sphi 0, %s84
    %s88 = sphi 0, %s87
    %s104 = sphi 0, %s88
    %s112 = sphi 0, %s114
    %s115 = sphi 0, %s112
    %s116 = sphi 0, %s115
    %s132 = sphi 0, %s116
    %s140 = sphi 0, %s142
    %s143 = sphi 0, %s140
    %s144 = sphi 0, %s143
    %s160 = sphi 0, %s144
  $region4: #{_lambda_.2} parent=0 // loop_header_branch
    %14 = sbr.rel (%p12) target = $region8
  $region5: #{_lambda_.2} parent=0 // loop_body
    %s16 = ssub.s32 %s11, 1
    %s17 = ssub.s32 %s11, 2
    %s24 = sadd.s32 1, %s19
    %p25 = scmp.ge.s32.totalorder %s24, 1
    %s26 = scalar_select %p25, 0, %s24
    %s27 = sadd.s32 1, %s18
    %s28 = scalar_select %p25, %s27, %s18
    %p29 = scmp.ge.s32.totalorder %s28, 2
    %s30 = scalar_select %p29, 0, %s28
    %s31 = ssub.s32 %s18, %s30
    %s32 = ssub.s32 %s19, %s26
    %s33 = sor.u32 %s31, %s32
    %p34 = scmp.eq.s32.totalorder %s33, 0
    %s36 = sadd.s32 %s35, 1
    %s37 = scalar_select %p34, %s35, %s36
    %p40 = pneg %p34
    %p41 = scmp.eq.s32.totalorder %s11, 1
    %p42 = por %p40, %p41
    %p43 = scmp.ne.s32.totalorder %s35, %s38
    %p44 = scmp.eq.s32.totalorder %s11, 0
    %p45 = por %p43, %p44
    %p46 = scmp.ne.s32.totalorder %s35, %s38
    %p47 = scmp.eq.s32.totalorder %s16, 1
    %p48 = por %p46, %p47
    %p49 = scmp.ne.s32.totalorder %s38, %s39
    %p50 = scmp.eq.s32.totalorder %s16, 0
    %p51 = por %p49, %p50
    %p52 = scmp.ne.s32.totalorder %s38, %s39
    %p53 = scmp.eq.s32.totalorder %s17, 1
    %p54 = por %p52, %p53
    %p56 = scmp.ne.s32.totalorder %s39, %s55
    %p57 = scmp.eq.s32.totalorder %s17, 0
    %p58 = por %p56, %p57
    %s60 = sadd.s32 %s59, 1
    %p63 = scmp.eq.s32.totalorder %s11, 1
    %p64 = scmp.ne.s32.totalorder %s59, %s61
    %p65 = scmp.eq.s32.totalorder %s11, 0
    %p66 = por %p64, %p65
    %p67 = scmp.ne.s32.totalorder %s59, %s61
    %p68 = scmp.eq.s32.totalorder %s16, 1
    %p69 = por %p67, %p68
    %p70 = scmp.ne.s32.totalorder %s61, %s62
    %p71 = scmp.eq.s32.totalorder %s16, 0
    %p72 = por %p70, %p71
    %p73 = scmp.ne.s32.totalorder %s61, %s62
    %p74 = scmp.eq.s32.totalorder %s17, 1
    %p75 = por %p73, %p74
    %p77 = scmp.ne.s32.totalorder %s62, %s76
    %p78 = scmp.eq.s32.totalorder %s17, 0
    %p79 = por %p77, %p78
    %s80 = ssub.s32 %s18, %s30
    %s81 = ssub.s32 %s19, %s26
    %s82 = sor.u32 %s80, %s81
    %p83 = scmp.eq.s32.totalorder %s82, 0
    %s85 = sadd.s32 %s84, 1
    %s86 = scalar_select %p83, %s84, %s85
    %p89 = pneg %p83
    %p90 = scmp.eq.s32.totalorder %s11, 1
    %p91 = por %p89, %p90
    %p92 = scmp.ne.s32.totalorder %s84, %s87
    %p93 = scmp.eq.s32.totalorder %s11, 0
    %p94 = por %p92, %p93
    %p95 = scmp.ne.s32.totalorder %s84, %s87
    %p96 = scmp.eq.s32.totalorder %s16, 1
    %p97 = por %p95, %p96
    %p98 = scmp.ne.s32.totalorder %s87, %s88
    %p99 = scmp.eq.s32.totalorder %s16, 0
    %p100 = por %p98, %p99
    %p101 = scmp.ne.s32.totalorder %s87, %s88
    %p102 = scmp.eq.s32.totalorder %s17, 1
    %p103 = por %p101, %p102
    %p105 = scmp.ne.s32.totalorder %s88, %s104
    %p106 = scmp.eq.s32.totalorder %s17, 0
    %p107 = por %p105, %p106
    %s108 = ssub.s32 %s18, %s30
    %s109 = ssub.s32 %s19, %s26
    %s110 = sor.u32 %s108, %s109
    %p111 = scmp.eq.s32.totalorder %s110, 0
    %s113 = sadd.s32 %s112, 1
    %s114 = scalar_select %p111, %s112, %s113
    %p117 = pneg %p111
    %p118 = scmp.eq.s32.totalorder %s11, 1
    %p119 = por %p117, %p118
    %p120 = scmp.ne.s32.totalorder %s112, %s115
    %p121 = scmp.eq.s32.totalorder %s11, 0
    %p122 = por %p120, %p121
    %p123 = scmp.ne.s32.totalorder %s112, %s115
    %p124 = scmp.eq.s32.totalorder %s16, 1
    %p125 = por %p123, %p124
    %p126 = scmp.ne.s32.totalorder %s115, %s116
    %p127 = scmp.eq.s32.totalorder %s16, 0
    %p128 = por %p126, %p127
    %p129 = scmp.ne.s32.totalorder %s115, %s116
    %p130 = scmp.eq.s32.totalorder %s17, 1
    %p131 = por %p129, %p130
    %p133 = scmp.ne.s32.totalorder %s116, %s132
    %p134 = scmp.eq.s32.totalorder %s17, 0
    %p135 = por %p133, %p134
    %s136 = ssub.s32 %s18, %s30
    %s137 = ssub.s32 %s19, %s26
    %s138 = sor.u32 %s136, %s137
    %p139 = scmp.eq.s32.totalorder %s138, 0
    %s141 = sadd.s32 %s140, 1
    %s142 = scalar_select %p139, %s140, %s141
    %p145 = pneg %p139
    %p146 = scmp.eq.s32.totalorder %s11, 1
    %p147 = por %p145, %p146
    %p148 = scmp.ne.s32.totalorder %s140, %s143
    %p149 = scmp.eq.s32.totalorder %s11, 0
    %p150 = por %p148, %p149
    %p151 = scmp.ne.s32.totalorder %s140, %s143
    %p152 = scmp.eq.s32.totalorder %s16, 1
    %p153 = por %p151, %p152
    %p154 = scmp.ne.s32.totalorder %s143, %s144
    %p155 = scmp.eq.s32.totalorder %s16, 0
    %p156 = por %p154, %p155
    %p157 = scmp.ne.s32.totalorder %s143, %s144
    %p158 = scmp.eq.s32.totalorder %s17, 1
    %p159 = por %p157, %p158
    %p161 = scmp.ne.s32.totalorder %s144, %s160
    %p162 = scmp.eq.s32.totalorder %s17, 0
    %p163 = por %p161, %p162
    %p164 = scmp.le.s32.totalorder 1, %s11
    %p165 = scmp.lt.s32.totalorder %s11, 3
    %p166 = pnand %p164, %p165
    %p167 = pneg %p166
    // Predicated region
    $region9: #{_lambda_.2} parent=5 // pred_check
      _
    $region10: #{_lambda_.2} parent=5 // pred_check_branch
      %169 = sbr.rel (%p166) target = $region12
    $region11: #{_lambda_.2} parent=5 // pred_region
      %s170 = ssub.s32 %s11, 1
      // Predicated region
      $region13: #{_lambda_.2} parent=11 // pred_check
        %p171 = pneg %p72
      $region14: #{_lambda_.2} parent=11 // pred_check_branch
        %173 = sbr.rel (%p171) target = $region16
      $region15: #{_lambda_.2} parent=11 // pred_region
        _
      $region16: #{_lambda_.2} parent=11 // pred_fallthru
        _
    $region12: #{_lambda_.2} parent=5 // pred_fallthru
      _
    %p174 = scmp.lt.s32.totalorder %s11, 2
    // Predicated region
    $region17: #{_lambda_.2} parent=5 // pred_check
      %p175 = pneg %p174
    $region18: #{_lambda_.2} parent=5 // pred_check_branch
      %177 = sbr.rel (%p175) target = $region20
    $region19: #{_lambda_.2} parent=5 // pred_region
      // Predicated region
      $region21: #{_lambda_.2} parent=19 // pred_check
        %p178 = pneg %p45
      $region22: #{_lambda_.2} parent=19 // pred_check_branch
        %180 = sbr.rel (%p178) target = $region24
      $region23: #{_lambda_.2} parent=19 // pred_region
        %p181 = scmp.lt.s32.totalorder %s18, 1
        %s182 = scalar_select %p181, %s18, 1
        %p183 = scmp.lt.s32.totalorder %s19, 0
        %s184 = scalar_select %p183, %s19, 0
        %s185 = smul.addr %s182, 8
        %s186 = sadd.s32 %s184, %s185
        %s187 = smul.addr %s186, 4
        %s188 = scalar_lea.vmem %s0, %s187
      $region24: #{_lambda_.2} parent=19 // pred_fallthru
        _
    $region20: #{_lambda_.2} parent=5 // pred_fallthru
      _
    %p189 = scmp.le.s32.totalorder 1, %s11
    %p190 = scmp.lt.s32.totalorder %s11, 3
    %p191 = pnand %p189, %p190
    %p192 = pneg %p191
    // Predicated region
    $region25: #{_lambda_.2} parent=5 // pred_check
      _
    $region26: #{_lambda_.2} parent=5 // pred_check_branch
      %194 = sbr.rel (%p191) target = $region28
    $region27: #{_lambda_.2} parent=5 // pred_region
      %s195 = ssub.s32 %s11, 1
      %p196 = scmp.lt.s32.totalorder %s20, 1
      %s197 = scalar_select %p196, %s20, 1
      %p198 = scmp.lt.s32.totalorder %s21, 0
      %s199 = scalar_select %p198, %s21, 0
      %s200 = smul.addr %s197, 8
      %s201 = sadd.s32 %s199, %s200
      %s202 = smul.addr %s201, 4
      %s203 = scalar_lea.vmem %s0, %s202
      %p204 = pneg %p51
      %p205 = pneg %p48
      %p206 = pneg %p72
      %p207 = pneg %p69
      %p208 = pneg %p100
      %p209 = pneg %p97
      %p210 = scmp.lt.s32.totalorder %s20, 1
      %s211 = scalar_select %p210, %s20, 1
      %p212 = scmp.lt.s32.totalorder %s21, 0
      %s213 = scalar_select %p212, %s21, 0
      %s214 = sadd.s32 %s213, %s211
      %s215 = smul.addr %s214, 4
      %s216 = scalar_lea.vmem %s2, %s215
      %p217 = pneg %p128
      %p218 = pneg %p125
      %p219 = scmp.lt.s32.totalorder %s20, 1
      %s220 = scalar_select %p219, %s20, 1
      %p221 = scmp.lt.s32.totalorder %s21, 0
      %s222 = scalar_select %p221, %s21, 0
      %s223 = sadd.s32 %s222, %s220
      %s224 = smul.addr %s223, 8
      %s225 = scalar_lea.vmem %s3, %s224
      %p226 = pneg %p156
      %p227 = pneg %p153
      %p228 = scmp.lt.s32.totalorder %s20, 1
      %s229 = scalar_select %p228, %s20, 1
      %p230 = scmp.lt.s32.totalorder %s21, 0
      %s231 = scalar_select %p230, %s21, 0
      %s232 = sadd.s32 %s231, %s229
      %s233 = smul.addr %s232, 8
      %s234 = scalar_lea.vmem %s4, %s233
      %p235 = scmp.lt.s32.totalorder %s20, 1
      %s236 = scalar_select %p235, %s20, 1
      %p237 = scmp.lt.s32.totalorder %s21, 0
      %s238 = scalar_select %p237, %s21, 0
      %s239 = smul.addr %s236, 8
      %s240 = sadd.s32 %s238, %s239
      %s241 = smul.addr %s240, 4
      %s242 = scalar_lea.vmem %s0, %s241
      %p243 = scmp.lt.s32.totalorder %s20, 1
      %s244 = scalar_select %p243, %s20, 1
      %p245 = scmp.lt.s32.totalorder %s21, 0
      %s246 = scalar_select %p245, %s21, 0
      %s247 = sadd.s32 %s246, %s244
      %s248 = smul.addr %s247, 4
      %s249 = scalar_lea.vmem %s2, %s248
      %p250 = scmp.lt.s32.totalorder %s20, 1
      %s251 = scalar_select %p250, %s20, 1
      %p252 = scmp.lt.s32.totalorder %s21, 0
      %s253 = scalar_select %p252, %s21, 0
      %s254 = sadd.s32 %s253, %s251
      %s255 = smul.addr %s254, 8
      %s256 = scalar_lea.vmem %s3, %s255
      %p257 = scmp.lt.s32.totalorder %s20, 1
      %s258 = scalar_select %p257, %s20, 1
      %p259 = scmp.lt.s32.totalorder %s21, 0
      %s260 = scalar_select %p259, %s21, 0
      %s261 = sadd.s32 %s260, %s258
      %s262 = smul.addr %s261, 8
      %s263 = scalar_lea.vmem %s4, %s262
      %v265 = vld [vmem:[%s1] sm:$0xf]
      %v266 = vld [vmem:[%s242] sm:$0xf]
      %v267 = vld [vmem:[%s242 + $0x4] sm:$0xf]
      %v268 = vld [vmem:[%s242 + $0x8] sm:$0xf]
      %v269 = vld [vmem:[%s242 + $0xc] sm:$0xf]
      %v270 = vld [vmem:[%s242 + $0x10] sm:$0xf]
      %v271 = vld [vmem:[%s242 + $0x14] sm:$0xf]
      %v272 = vld [vmem:[%s242 + $0x18] sm:$0xf]
      %v273 = vld [vmem:[%s242 + $0x1c] sm:$0xf]
      %v282 = vunpack.c.l.b16 %v266
      %v283 = vunpack.c.l.b16 %v267
      %v284 = vunpack.c.l.b16 %v268
      %v285 = vunpack.c.l.b16 %v269
      %v286 = vunpack.c.l.b16 %v270
      %v287 = vunpack.c.l.b16 %v271
      %v288 = vunpack.c.l.b16 %v272
      %v289 = vunpack.c.l.b16 %v273
      %v290 = vpack.c.b16 %v283, %v282
      %v291 = vpack.c.b16 %v285, %v284
      %v292 = vpack.c.b16 %v287, %v286
      %v293 = vpack.c.b16 %v289, %v288
      %vm298 = vcmask 523264
      %v300 = vsel %vm298, %v265, 0
      %302 = vmatprep.subr.bf16.mxu0 0
      %303 = vmatpush1.bf16.msra.mxu0 0
      %304 = vmatprep.subr.bf16.mxu0 0
      %305 = vmatpush1.bf16.msra.mxu0 0
      %306 = vmatprep.subr.bf16.mxu0 0
      %307 = vmatpush1.bf16.msra.mxu0 0
      %308 = vmatprep.subr.bf16.mxu0 0
      %309 = vmatpush1.bf16.msra.mxu0 0
      %310 = vmatprep.subr.bf16.mxu0 0
      %311 = vmatpush1.bf16.msra.mxu0 %v293
      %312 = vmatprep.subr.bf16.mxu0 0
      %313 = vmatpush1.bf16.msra.mxu0 %v292
      %314 = vmatprep.subr.bf16.mxu0 0
      %315 = vmatpush1.bf16.msra.mxu0 %v291
      %316 = vmatprep.subr.bf16.mxu0 0
      %317 = vmatpush1.bf16.msra.mxu0 %v290
      %318 = vmatprep.subr.bf16.mxu0 0
      %319 = vmatpush2.bf16.msra.mxu0 0
      %320 = vmatprep.subr.bf16.mxu0 0
      %321 = vmatpush2.bf16.msra.mxu0 0
      %322 = vmatprep.subr.bf16.mxu0 0
      %323 = vmatpush2.bf16.msra.mxu0 0
      %324 = vmatprep.subr.bf16.mxu0 0
      %325 = vmatpush2.bf16.msra.mxu0 0
      %326 = vmatprep.subr.bf16.mxu0 0
      %327 = vmatpush2.bf16.msra.mxu0 0
      %328 = vmatprep.subr.bf16.mxu0 0
      %329 = vmatpush2.bf16.msra.mxu0 0
      %330 = vmatprep.subr.bf16.mxu0 0
      %331 = vmatpush2.bf16.msra.mxu0 0
      %332 = vmatprep.subr.bf16.mxu0 0
      %333 = vmatpush2.bf16.msra.mxu0 0
      %334 = vmatprep.mubr.bf16.mxu0 0
      %335 = vmatmul.mubr.bf16.gmra.mxu0 %v300
      %v336 = vpop.f32.mrf.mxu0
      %v337 = vadd.f32 0.0, %v336
      %v338 = vpop.f32.mrf.mxu0
      %v339 = vpop.f32.mrf.mxu0
      %v340 = vpop.f32.mrf.mxu0
      %341 = vdwg.mxu0
      %v342 = vpack.c.bf16 %v337, %v337
      %vm343 = vcmask 519168
      %344 = vst.msk [vmem:[%s249] sm:$0xf] %vm343, %v342
      %v345 = vsel %vm298, %v337, 0.0
      %346 = vadd.xlane.f32.xlu0 %v345
      %v347 = vpop.xlane.xlu0 %346
      %vm348 = vcmask 7168
      %349 = vst.msk [vmem:[%s256] sm:$0xff] %vm348, %v347
      %v350 = vmul.f32 %v337, %v337
      %v351 = vsel %vm298, %v350, 0.0
      %352 = vadd.xlane.f32.xlu0 %v351
      %v353 = vpop.xlane.xlu0 %352
      %354 = vst.msk [vmem:[%s263] sm:$0xff] %vm348, %v353
      %p355 = scmp.lt.s32.totalorder %s20, 1
      %s356 = scalar_select %p355, %s20, 1
      %p357 = scmp.lt.s32.totalorder %s21, 0
      %s358 = scalar_select %p357, %s21, 0
      %s359 = sadd.s32 %s358, %s356
      %s360 = smul.addr %s359, 4
      %s361 = scalar_lea.vmem %s2, %s360
      %p362 = scmp.lt.s32.totalorder %s20, 1
      %s363 = scalar_select %p362, %s20, 1
      %p364 = scmp.lt.s32.totalorder %s21, 0
      %s365 = scalar_select %p364, %s21, 0
      %s366 = sadd.s32 %s365, %s363
      %s367 = smul.addr %s366, 8
      %s368 = scalar_lea.vmem %s3, %s367
      %p369 = scmp.lt.s32.totalorder %s20, 1
      %s370 = scalar_select %p369, %s20, 1
      %p371 = scmp.lt.s32.totalorder %s21, 0
      %s372 = scalar_select %p371, %s21, 0
      %s373 = sadd.s32 %s372, %s370
      %s374 = smul.addr %s373, 8
      %s375 = scalar_lea.vmem %s4, %s374
      // Predicated region
      $region29: #{_lambda_.2} parent=27 // pred_check
        %p376 = pneg %p97
      $region30: #{_lambda_.2} parent=27 // pred_check_branch
        %378 = sbr.rel (%p376) target = $region32
      $region31: #{_lambda_.2} parent=27 // pred_region
        _
      $region32: #{_lambda_.2} parent=27 // pred_fallthru
        _
      // Predicated region
      $region33: #{_lambda_.2} parent=27 // pred_check
        %p379 = pneg %p125
      $region34: #{_lambda_.2} parent=27 // pred_check_branch
        %381 = sbr.rel (%p379) target = $region36
      $region35: #{_lambda_.2} parent=27 // pred_region
        _
      $region36: #{_lambda_.2} parent=27 // pred_fallthru
        _
      // Predicated region
      $region37: #{_lambda_.2} parent=27 // pred_check
        %p382 = pneg %p153
      $region38: #{_lambda_.2} parent=27 // pred_check_branch
        %384 = sbr.rel (%p382) target = $region40
      $region39: #{_lambda_.2} parent=27 // pred_region
        _
      $region40: #{_lambda_.2} parent=27 // pred_fallthru
        _
    $region28: #{_lambda_.2} parent=5 // pred_fallthru
      _
    %p385 = scmp.le.s32.totalorder 2, %s11
    // Predicated region
    $region41: #{_lambda_.2} parent=5 // pred_check
      %p386 = pneg %p385
    $region42: #{_lambda_.2} parent=5 // pred_check_branch
      %388 = sbr.rel (%p386) target = $region44
    $region43: #{_lambda_.2} parent=5 // pred_region
      %s389 = ssub.s32 %s11, 2
      // Predicated region
      $region45: #{_lambda_.2} parent=43 // pred_check
        %p390 = pneg %p103
      $region46: #{_lambda_.2} parent=43 // pred_check_branch
        %392 = sbr.rel (%p390) target = $region48
      $region47: #{_lambda_.2} parent=43 // pred_region
        %p393 = scmp.lt.s32.totalorder %s22, 1
        %s394 = scalar_select %p393, %s22, 1
        %p395 = scmp.lt.s32.totalorder %s23, 0
        %s396 = scalar_select %p395, %s23, 0
        %s397 = sadd.s32 %s396, %s394
        %s398 = smul.addr %s397, 4
        %s399 = scalar_lea.vmem %s2, %s398
      $region48: #{_lambda_.2} parent=43 // pred_fallthru
        _
      // Predicated region
      $region49: #{_lambda_.2} parent=43 // pred_check
        %p400 = pneg %p131
      $region50: #{_lambda_.2} parent=43 // pred_check_branch
        %402 = sbr.rel (%p400) target = $region52
      $region51: #{_lambda_.2} parent=43 // pred_region
        %p403 = scmp.lt.s32.totalorder %s22, 1
        %s404 = scalar_select %p403, %s22, 1
        %p405 = scmp.lt.s32.totalorder %s23, 0
        %s406 = scalar_select %p405, %s23, 0
        %s407 = sadd.s32 %s406, %s404
        %s408 = smul.addr %s407, 8
        %s409 = scalar_lea.vmem %s3, %s408
      $region52: #{_lambda_.2} parent=43 // pred_fallthru
        _
      // Predicated region
      $region53: #{_lambda_.2} parent=43 // pred_check
        %p410 = pneg %p159
      $region54: #{_lambda_.2} parent=43 // pred_check_branch
        %412 = sbr.rel (%p410) target = $region56
      $region55: #{_lambda_.2} parent=43 // pred_region
        %p413 = scmp.lt.s32.totalorder %s22, 1
        %s414 = scalar_select %p413, %s22, 1
        %p415 = scmp.lt.s32.totalorder %s23, 0
        %s416 = scalar_select %p415, %s23, 0
        %s417 = sadd.s32 %s416, %s414
        %s418 = smul.addr %s417, 8
        %s419 = scalar_lea.vmem %s4, %s418
      $region56: #{_lambda_.2} parent=43 // pred_fallthru
        _
    $region44: #{_lambda_.2} parent=5 // pred_fallthru
      _
  $region6: #{_lambda_.2} parent=0 // loop_footer
    %s15 = sadd.s32 1, %s11
  $region7: #{_lambda_.2} parent=0 // loop_footer_branch
    %10 = sbr.rel target = $region3
  $region8: #{_lambda_.2} parent=0 // loop_exit
    _

</llo_original>
